<compile_context>
chip_gen: v7x
topology: tpu7x:2x2x1
jax: 0.10.0
libtpu: 0.0.40
codegen_flags: <defaults>
</compile_context>

<pallas_src>
import functools

import jax
import jax.numpy as jnp
import numpy as np
from jax import lax
from jax.experimental import pallas as pl
from jax.experimental.pallas import tpu as pltpu

NUM_NEGATIVES = 5
_EPS = 1e-8  # F.cosine_similarity default eps (clamps the product of norms)


# ----------------------------------------------------------------------------
# Shared in-kernel helper: Gram matrix -> 0/1 top-k selection matrix W.
# ----------------------------------------------------------------------------
def _selection_matrix_from_gram(dots, k: int, out_dtype):
    """dots: [B, B] f32 Gram matrix (x @ x.T).  Returns W [B, B] in out_dtype."""
    B = dots.shape[0]
    row_ids = lax.broadcasted_iota(jnp.int32, (B, B), 0)
    col_ids = lax.broadcasted_iota(jnp.int32, (B, B), 1)
    diag = row_ids == col_ids

    # Squared norms from the Gram diagonal -> no separate [B, D] norm pass.
    diag_dots = jnp.where(diag, dots, 0.0)
    sq_i = jnp.sum(diag_dots, axis=1, keepdims=True)  # [B, 1] = ||x_i||^2
    sq_j = jnp.sum(diag_dots, axis=0, keepdims=True)  # [1, B] = ||x_j||^2
    denom = jnp.maximum(jnp.sqrt(sq_i * sq_j), jnp.float32(_EPS))
    sim = jnp.where(diag, jnp.float32(-1.0), dots / denom)  # self -> -1

    # Iterative top-k (k static & tiny); ties broken toward the smallest
    # column index to match torch.topk ordering.
    w = jnp.zeros((B, B), jnp.float32)
    s = sim
    for _ in range(k):
        m = jnp.max(s, axis=1, keepdims=True)
        is_max = s >= m
        min_idx = jnp.min(jnp.where(is_max, col_ids, B), axis=1, keepdims=True)
        onehot = (col_ids == min_idx).astype(jnp.float32)
        w = w + onehot
        s = jnp.where(onehot > 0.0, jnp.float32(-3.0), s)
    # 0/1 entries are exact in any float dtype -> keep feature dtype so the
    # averaging matmul runs natively on the MXU.
    return w.astype(out_dtype)


# ----------------------------------------------------------------------------
# Kernel 1: single-block fast path (whole [B, D] resident in VMEM).
# ----------------------------------------------------------------------------
def _hard_negative_single_kernel(x_ref, o_ref, *, k: int):
    x = x_ref[...]
    dots = lax.dot_general(
        x, x, (((1,), (1,)), ((), ())), preferred_element_type=jnp.float32
    )
    w = _selection_matrix_from_gram(dots, k, x.dtype)
    acc = jnp.dot(w, x, preferred_element_type=jnp.float32)
    o_ref[...] = (acc * jnp.float32(1.0 / k)).astype(o_ref.dtype)


# ----------------------------------------------------------------------------
# Kernel 2: two-phase D-tiled path for feature matrices too large for VMEM.
#   grid = (phase, d_chunk).  phase 0: Gram accumulate; phase 1: W @ x emit.
# ----------------------------------------------------------------------------
def _hard_negative_tiled_kernel(x_ref, o_ref, dots_ref, w_ref, *, k: int):
    p = pl.program_id(0)
    j = pl.program_id(1)

    @pl.when(jnp.logical_and(p == 0, j == 0))
    def _init():
        dots_ref[...] = jnp.zeros_like(dots_ref)

    @pl.when(p == 0)
    def _accumulate_gram():
        xc = x_ref[...]
        dots_ref[...] += lax.dot_general(
            xc, xc, (((1,), (1,)), ((), ())), preferred_element_type=jnp.float32
        )

    @pl.when(jnp.logical_and(p == 1, j == 0))
    def _build_selection():
        w_ref[...] = _selection_matrix_from_gram(dots_ref[...], k, w_ref.dtype)

    @pl.when(p == 1)
    def _emit():
        acc = jnp.dot(w_ref[...], x_ref[...], preferred_element_type=jnp.float32)
        o_ref[...] = (acc * jnp.float32(1.0 / k)).astype(o_ref.dtype)


# ----------------------------------------------------------------------------
# VMEM budgeting & tile selection (generation aware).
# ----------------------------------------------------------------------------
def _vmem_limits():
    fallback_cap = 64 * 1024 * 1024  # v7x per-TC physical VMEM; safe everywhere
    cap = fallback_cap
    get_info = getattr(pltpu, "get_tpu_info", None)
    if get_info is not None:
        try:
            info = get_info()
            cap = int(getattr(info, "vmem_capacity_bytes", fallback_cap)) or fallback_cap
        except Exception:
            cap = fallback_cap
    vmem_limit = max(int(cap * 0.8), 16 * 1024 * 1024)   # raised scoped limit
    budget = int(vmem_limit * 0.85)                       # headroom for scratch
    return vmem_limit, budget


def _choose_tile(d128: int, b: int, itemsize: int, budget: int):
    """Largest lane-dense (multiple of 128) tile such that 2 in + 2 out buffers
    fit the budget; prefers a tile that divides d128 (no extra padding)."""
    cap = max(128, (budget // (4 * b * itemsize)) // 128 * 128)
    cap = min(cap, d128)
    td = cap
    cand = cap
    while cand >= max(128, cap // 2):
        if d128 % cand == 0:
            td = cand
            break
        cand -= 128
    n_d = -(-d128 // td)
    return td, n_d


# ----------------------------------------------------------------------------
# Public wrapper.
# ----------------------------------------------------------------------------
def hard_negative_mining(
    features: jax.Array,
    num_negatives: int = NUM_NEGATIVES,
    *,
    _force_budget_bytes: int | None = None,  # test hook: force the tiled path
):
    """features: [B, C, H, W] (any trailing spatial dims) -> same shape/dtype."""
    B = features.shape[0]
    spatial = features.shape[1:]
    D = int(np.prod(spatial)) if spatial else 1
    k = min(num_negatives, B - 1)
    if k < 1:
        # torch path: empty topk -> hard_negatives[i] = features[i]
        return features

    itemsize = jnp.dtype(features.dtype).itemsize
    vmem_limit, budget = _vmem_limits()
    if _force_budget_bytes is not None:
        budget = int(_force_budget_bytes)

    # Pad the flattened feature axis to a multiple of 128 (lane-dense stores).
    D128 = -(-D // 128) * 128
    x = features.reshape(B, D)

    single_block_bytes = 4 * B * D128 * itemsize  # 2x input + 2x output buffers

    if single_block_bytes <= budget:
        # ---------------- single-block fast path ----------------
        x_pad = jnp.pad(x, ((0, 0), (0, D128 - D))) if D128 != D else x
        cost = pl.CostEstimate(
            flops=4 * B * B * D128,
            transcendentals=0,
            bytes_accessed=2 * B * D128 * itemsize,  # one read, one write
        )
        out_flat = pl.pallas_call(
            functools.partial(_hard_negative_single_kernel, k=k),
            out_shape=jax.ShapeDtypeStruct((B, D128), features.dtype),
            grid_spec=pltpu.PrefetchScalarGridSpec(
                num_scalar_prefetch=0,
                grid=(1,),
                in_specs=[pl.BlockSpec((B, D128), lambda i: (0, 0))],
                out_specs=pl.BlockSpec((B, D128), lambda i: (0, 0)),
            ),
            compiler_params=pltpu.CompilerParams(
                dimension_semantics=("arbitrary",),
                vmem_limit_bytes=vmem_limit,
            ),
            cost_estimate=cost,
        )(x_pad)
        out_flat = out_flat[:, :D] if D128 != D else out_flat
        return out_flat.reshape((B,) + spatial)

    # ---------------- two-phase tiled path (very large D) ----------------
    td, n_d = _choose_tile(D128, B, itemsize, budget)
    D_pad = td * n_d
    x_pad = jnp.pad(x, ((0, 0), (0, D_pad - D))) if D_pad != D else x

    def x_index_map(p, j):
        # phase 0: forward order; phase 1: reversed order so the last Gram
        # chunk (still VMEM-resident) is reused without a re-DMA.
        return (0, j + p * (n_d - 1 - 2 * j))

    def o_index_map(p, j):
        # Output parked on block n_d-1 during phase 0: the block index does
        # not change until phase-1 step 1, and by then the kernel has already
        # overwritten the buffer -- no garbage is ever flushed to HBM.
        return (0, n_d - 1 - j * p)

    cost = pl.CostEstimate(
        flops=4 * B * B * D_pad,
        transcendentals=0,
        bytes_accessed=3 * B * D_pad * itemsize,  # ~2 reads (minus 1 chunk) + 1 write
    )
    out_flat = pl.pallas_call(
        functools.partial(_hard_negative_tiled_kernel, k=k),
        out_shape=jax.ShapeDtypeStruct((B, D_pad), features.dtype),
        grid_spec=pltpu.PrefetchScalarGridSpec(
            num_scalar_prefetch=0,
            grid=(2, n_d),
            in_specs=[pl.BlockSpec((B, td), x_index_map)],
            out_specs=pl.BlockSpec((B, td), o_index_map),
            scratch_shapes=[
                pltpu.VMEM((B, B), jnp.float32),      # Gram accumulator
                pltpu.VMEM((B, B), features.dtype),   # 0/1 selection matrix
            ],
        ),
        compiler_params=pltpu.CompilerParams(
            dimension_semantics=("arbitrary", "arbitrary"),  # phase + D reduction
            vmem_limit_bytes=vmem_limit,
        ),
        cost_estimate=cost,
    )(x_pad)
    out_flat = out_flat[:, :D] if D_pad != D else out_flat
    return out_flat.reshape((B,) + spatial)


# ----------------------------------------------------------------------------
# Pure-JAX mirror of the PyTorch forward (f32 math) for correctness checks.
# ----------------------------------------------------------------------------
def _reference(features: jax.Array, num_negatives: int = NUM_NEGATIVES):
    B = features.shape[0]
    x = features.reshape(B, -1).astype(jnp.float32)
    norms = jnp.sqrt(jnp.sum(x * x, axis=1))
    sim = (x @ x.T) / jnp.maximum(norms[:, None] * norms[None, :], _EPS)
    sim = sim.at[jnp.arange(B), jnp.arange(B)].set(-1.0)
    k = min(num_negatives, B - 1)
    _, idx = lax.top_k(sim, k)                      # [B, k]
    gathered = features.astype(jnp.float32)[idx]    # [B, k, ...]
    return gathered.mean(axis=1)


if __name__ == "__main__":
    key = jax.random.PRNGKey(0)
    k1, k2, k3, k4 = jax.random.split(key, 4)

    # Case 1: single-block fast path (B=8, D=4*16*16=1024, f32).
    f1 = jax.random.normal(k1, (8, 4, 16, 16), dtype=jnp.float32)
    out1 = jax.block_until_ready(hard_negative_mining(f1, NUM_NEGATIVES))
    ref1 = _reference(f1, NUM_NEGATIVES)
    np.testing.assert_allclose(np.asarray(out1), np.asarray(ref1), rtol=1e-5, atol=1e-5)

    # Case 2: forced tiled path (D=8*16*16=2048, budget forces td=512, n_d=4).
    f2 = jax.random.normal(k2, (8, 8, 16, 16), dtype=jnp.float32)
    out2 = jax.block_until_ready(
        hard_negative_mining(f2, NUM_NEGATIVES, _force_budget_bytes=64 * 1024)
    )
    ref2 = _reference(f2, NUM_NEGATIVES)
    np.testing.assert_allclose(np.asarray(out2), np.asarray(ref2), rtol=1e-5, atol=1e-5)

    # Case 3: non-128-multiple D (D=300 -> padded to 384), single-block path.
    f3 = jax.random.normal(k3, (8, 3, 10, 10), dtype=jnp.float32)
    out3 = jax.block_until_ready(hard_negative_mining(f3, NUM_NEGATIVES))
    ref3 = _reference(f3, NUM_NEGATIVES)
    np.testing.assert_allclose(np.asarray(out3), np.asarray(ref3), rtol=1e-5, atol=1e-5)

    # Case 4: forced tiled path where the tile does NOT divide D128
    # (D=13*8*16=1664 -> padded to 2048 with td=512, n_d=4).
    f4 = jax.random.normal(k4, (8, 13, 8, 16), dtype=jnp.float32)
    out4 = jax.block_until_ready(
        hard_negative_mining(f4, NUM_NEGATIVES, _force_budget_bytes=64 * 1024)
    )
    ref4 = _reference(f4, NUM_NEGATIVES)
    np.testing.assert_allclose(np.asarray(out4), np.asarray(ref4), rtol=1e-5, atol=1e-5)

    # Case 5: native bf16 I/O sanity (near-tie top-k picks can legitimately
    # differ from the f32 reference, so only shape/dtype/finiteness checked).
    f5 = f1.astype(jnp.bfloat16)
    out5 = jax.block_until_ready(hard_negative_mining(f5, NUM_NEGATIVES))
    assert out5.shape == f1.shape and out5.dtype == jnp.bfloat16
    assert bool(jnp.all(jnp.isfinite(out5.astype(jnp.float32))))

    print("KERNEL_OK")
</pallas_src>

<mosaic_0001>
module attributes {stable_mosaic.version = 11 : i64} {
  func.func @_hard_negative_single_kernel(%arg0: i32, %arg1: memref<8x1024xf32, #tpu.memory_space<vmem>>, %arg2: memref<8x1024xf32, #tpu.memory_space<vmem>>) attributes {dimension_semantics = [#tpu.dimension_semantics<arbitrary>], iteration_bounds = array<i64: 1>, scalar_prefetch = 0 : i64, scratch_operands = 0 : i64, tpu.core_type = #tpu.core_type<tc>, window_params = [{pipeline_mode = #tpu.pipeline_mode<synchronous>, transform_indices = @transform_0, window_bounds = array<i64: 8, 1024>}, {pipeline_mode = #tpu.pipeline_mode<synchronous>, transform_indices = @transform_1, window_bounds = array<i64: 8, 1024>}]} {
    %c0 = arith.constant 0 : index
    %c0_0 = arith.constant 0 : index
    %0 = vector.load %arg1[%c0, %c0_0] : memref<8x1024xf32, #tpu.memory_space<vmem>>, vector<8x1024xf32>
    %cst = arith.constant dense<0.000000e+00> : vector<8x8xf32>
    %1 = tpu.matmul %0, %0, %cst {dimension_numbers = #tpu.dot_dimension_numbers<[1], [1], [0], [0], [0, 0, 1, 0], [], []>} : vector<8x1024xf32>, vector<8x1024xf32>, vector<8x8xf32> -> vector<8x8xf32>
    %2 = tpu.iota {dimensions = array<i32: 0>} : vector<8x8xi32>
    %3 = tpu.iota {dimensions = array<i32: 1>} : vector<8x8xi32>
    %4 = arith.cmpi eq, %2, %3 : vector<8x8xi32>
    %cst_1 = arith.constant 0.000000e+00 : f32
    %5 = vector.broadcast %cst_1 : f32 to vector<8x8xf32>
    %6 = arith.select %4, %1, %5 : vector<8x8xi1>, vector<8x8xf32>
    %cst_2 = arith.constant dense<0.000000e+00> : vector<8xf32>
    %7 = vector.multi_reduction <add>, %6, %cst_2 [1] : vector<8x8xf32> to vector<8xf32>
    %8 = vector.shape_cast %7 : vector<8xf32> to vector<8x1xf32>
    %cst_3 = arith.constant dense<0.000000e+00> : vector<8xf32>
    %9 = vector.multi_reduction <add>, %6, %cst_3 [0] : vector<8x8xf32> to vector<8xf32>
    %10 = vector.shape_cast %9 : vector<8xf32> to vector<1x8xf32>
    %11 = vector.broadcast %8 : vector<8x1xf32> to vector<8x8xf32>
    %12 = vector.broadcast %10 : vector<1x8xf32> to vector<8x8xf32>
    %13 = arith.mulf %11, %12 : vector<8x8xf32>
    %14 = math.sqrt %13 : vector<8x8xf32>
    %cst_4 = arith.constant 9.99999993E-9 : f32
    %15 = vector.broadcast %cst_4 : f32 to vector<8x8xf32>
    %16 = arith.maximumf %14, %15 : vector<8x8xf32>
    %17 = arith.divf %1, %16 : vector<8x8xf32>
    %cst_5 = arith.constant -1.000000e+00 : f32
    %18 = vector.broadcast %cst_5 : f32 to vector<8x8xf32>
    %19 = arith.select %4, %18, %17 : vector<8x8xi1>, vector<8x8xf32>
    %cst_6 = arith.constant 0.000000e+00 : f32
    %20 = vector.broadcast %cst_6 : f32 to vector<8x8xf32>
    %cst_7 = arith.constant dense<0xFF800000> : vector<8xf32>
    %21 = vector.multi_reduction <maximumf>, %19, %cst_7 [1] : vector<8x8xf32> to vector<8xf32>
    %22 = vector.shape_cast %21 : vector<8xf32> to vector<8x1xf32>
    %23 = vector.broadcast %22 : vector<8x1xf32> to vector<8x8xf32>
    %24 = arith.cmpf oge, %19, %23 : vector<8x8xf32>
    %c8_i32 = arith.constant 8 : i32
    %25 = vector.broadcast %c8_i32 : i32 to vector<8x8xi32>
    %26 = arith.select %24, %3, %25 : vector<8x8xi1>, vector<8x8xi32>
    %cst_8 = arith.constant dense<2147483647> : vector<8xi32>
    %27 = vector.multi_reduction <minsi>, %26, %cst_8 [1] : vector<8x8xi32> to vector<8xi32>
    %28 = vector.shape_cast %27 : vector<8xi32> to vector<8x1xi32>
    %29 = vector.broadcast %28 : vector<8x1xi32> to vector<8x8xi32>
    %30 = arith.cmpi eq, %3, %29 : vector<8x8xi32>
    %31 = arith.extui %30 : vector<8x8xi1> to vector<8x8xi32>
    %32 = arith.sitofp %31 : vector<8x8xi32> to vector<8x8xf32>
    %33 = arith.addf %20, %32 : vector<8x8xf32>
    %cst_9 = arith.constant 0.000000e+00 : f32
    %34 = vector.broadcast %cst_9 : f32 to vector<8x8xf32>
    %35 = arith.cmpf ogt, %32, %34 : vector<8x8xf32>
    %cst_10 = arith.constant -3.000000e+00 : f32
    %36 = vector.broadcast %cst_10 : f32 to vector<8x8xf32>
    %37 = arith.select %35, %36, %19 : vector<8x8xi1>, vector<8x8xf32>
    %cst_11 = arith.constant dense<0xFF800000> : vector<8xf32>
    %38 = vector.multi_reduction <maximumf>, %37, %cst_11 [1] : vector<8x8xf32> to vector<8xf32>
    %39 = vector.shape_cast %38 : vector<8xf32> to vector<8x1xf32>
    %40 = vector.broadcast %39 : vector<8x1xf32> to vector<8x8xf32>
    %41 = arith.cmpf oge, %37, %40 : vector<8x8xf32>
    %c8_i32_12 = arith.constant 8 : i32
    %42 = vector.broadcast %c8_i32_12 : i32 to vector<8x8xi32>
    %43 = arith.select %41, %3, %42 : vector<8x8xi1>, vector<8x8xi32>
    %cst_13 = arith.constant dense<2147483647> : vector<8xi32>
    %44 = vector.multi_reduction <minsi>, %43, %cst_13 [1] : vector<8x8xi32> to vector<8xi32>
    %45 = vector.shape_cast %44 : vector<8xi32> to vector<8x1xi32>
    %46 = vector.broadcast %45 : vector<8x1xi32> to vector<8x8xi32>
    %47 = arith.cmpi eq, %3, %46 : vector<8x8xi32>
    %48 = arith.extui %47 : vector<8x8xi1> to vector<8x8xi32>
    %49 = arith.sitofp %48 : vector<8x8xi32> to vector<8x8xf32>
    %50 = arith.addf %33, %49 : vector<8x8xf32>
    %cst_14 = arith.constant 0.000000e+00 : f32
    %51 = vector.broadcast %cst_14 : f32 to vector<8x8xf32>
    %52 = arith.cmpf ogt, %49, %51 : vector<8x8xf32>
    %cst_15 = arith.constant -3.000000e+00 : f32
    %53 = vector.broadcast %cst_15 : f32 to vector<8x8xf32>
    %54 = arith.select %52, %53, %37 : vector<8x8xi1>, vector<8x8xf32>
    %cst_16 = arith.constant dense<0xFF800000> : vector<8xf32>
    %55 = vector.multi_reduction <maximumf>, %54, %cst_16 [1] : vector<8x8xf32> to vector<8xf32>
    %56 = vector.shape_cast %55 : vector<8xf32> to vector<8x1xf32>
    %57 = vector.broadcast %56 : vector<8x1xf32> to vector<8x8xf32>
    %58 = arith.cmpf oge, %54, %57 : vector<8x8xf32>
    %c8_i32_17 = arith.constant 8 : i32
    %59 = vector.broadcast %c8_i32_17 : i32 to vector<8x8xi32>
    %60 = arith.select %58, %3, %59 : vector<8x8xi1>, vector<8x8xi32>
    %cst_18 = arith.constant dense<2147483647> : vector<8xi32>
    %61 = vector.multi_reduction <minsi>, %60, %cst_18 [1] : vector<8x8xi32> to vector<8xi32>
    %62 = vector.shape_cast %61 : vector<8xi32> to vector<8x1xi32>
    %63 = vector.broadcast %62 : vector<8x1xi32> to vector<8x8xi32>
    %64 = arith.cmpi eq, %3, %63 : vector<8x8xi32>
    %65 = arith.extui %64 : vector<8x8xi1> to vector<8x8xi32>
    %66 = arith.sitofp %65 : vector<8x8xi32> to vector<8x8xf32>
    %67 = arith.addf %50, %66 : vector<8x8xf32>
    %cst_19 = arith.constant 0.000000e+00 : f32
    %68 = vector.broadcast %cst_19 : f32 to vector<8x8xf32>
    %69 = arith.cmpf ogt, %66, %68 : vector<8x8xf32>
    %cst_20 = arith.constant -3.000000e+00 : f32
    %70 = vector.broadcast %cst_20 : f32 to vector<8x8xf32>
    %71 = arith.select %69, %70, %54 : vector<8x8xi1>, vector<8x8xf32>
    %cst_21 = arith.constant dense<0xFF800000> : vector<8xf32>
    %72 = vector.multi_reduction <maximumf>, %71, %cst_21 [1] : vector<8x8xf32> to vector<8xf32>
    %73 = vector.shape_cast %72 : vector<8xf32> to vector<8x1xf32>
    %74 = vector.broadcast %73 : vector<8x1xf32> to vector<8x8xf32>
    %75 = arith.cmpf oge, %71, %74 : vector<8x8xf32>
    %c8_i32_22 = arith.constant 8 : i32
    %76 = vector.broadcast %c8_i32_22 : i32 to vector<8x8xi32>
    %77 = arith.select %75, %3, %76 : vector<8x8xi1>, vector<8x8xi32>
    %cst_23 = arith.constant dense<2147483647> : vector<8xi32>
    %78 = vector.multi_reduction <minsi>, %77, %cst_23 [1] : vector<8x8xi32> to vector<8xi32>
    %79 = vector.shape_cast %78 : vector<8xi32> to vector<8x1xi32>
    %80 = vector.broadcast %79 : vector<8x1xi32> to vector<8x8xi32>
    %81 = arith.cmpi eq, %3, %80 : vector<8x8xi32>
    %82 = arith.extui %81 : vector<8x8xi1> to vector<8x8xi32>
    %83 = arith.sitofp %82 : vector<8x8xi32> to vector<8x8xf32>
    %84 = arith.addf %67, %83 : vector<8x8xf32>
    %cst_24 = arith.constant 0.000000e+00 : f32
    %85 = vector.broadcast %cst_24 : f32 to vector<8x8xf32>
    %86 = arith.cmpf ogt, %83, %85 : vector<8x8xf32>
    %cst_25 = arith.constant -3.000000e+00 : f32
    %87 = vector.broadcast %cst_25 : f32 to vector<8x8xf32>
    %88 = arith.select %86, %87, %71 : vector<8x8xi1>, vector<8x8xf32>
    %cst_26 = arith.constant dense<0xFF800000> : vector<8xf32>
    %89 = vector.multi_reduction <maximumf>, %88, %cst_26 [1] : vector<8x8xf32> to vector<8xf32>
    %90 = vector.shape_cast %89 : vector<8xf32> to vector<8x1xf32>
    %91 = vector.broadcast %90 : vector<8x1xf32> to vector<8x8xf32>
    %92 = arith.cmpf oge, %88, %91 : vector<8x8xf32>
    %c8_i32_27 = arith.constant 8 : i32
    %93 = vector.broadcast %c8_i32_27 : i32 to vector<8x8xi32>
    %94 = arith.select %92, %3, %93 : vector<8x8xi1>, vector<8x8xi32>
    %cst_28 = arith.constant dense<2147483647> : vector<8xi32>
    %95 = vector.multi_reduction <minsi>, %94, %cst_28 [1] : vector<8x8xi32> to vector<8xi32>
    %96 = vector.shape_cast %95 : vector<8xi32> to vector<8x1xi32>
    %97 = vector.broadcast %96 : vector<8x1xi32> to vector<8x8xi32>
    %98 = arith.cmpi eq, %3, %97 : vector<8x8xi32>
    %99 = arith.extui %98 : vector<8x8xi1> to vector<8x8xi32>
    %100 = arith.sitofp %99 : vector<8x8xi32> to vector<8x8xf32>
    %101 = arith.addf %84, %100 : vector<8x8xf32>
    %cst_29 = arith.constant dense<0.000000e+00> : vector<8x1024xf32>
    %102 = tpu.matmul %101, %0, %cst_29 {dimension_numbers = #tpu.dot_dimension_numbers<[1], [0], [0], [1], [0, 0, 1, 1], [], []>} : vector<8x8xf32>, vector<8x1024xf32>, vector<8x1024xf32> -> vector<8x1024xf32>
    %cst_30 = arith.constant 2.000000e-01 : f32
    %103 = vector.broadcast %cst_30 : f32 to vector<8x1024xf32>
    %104 = arith.mulf %102, %103 : vector<8x1024xf32>
    %c0_31 = arith.constant 0 : index
    %c0_32 = arith.constant 0 : index
    %105 = vector.load %arg2[%c0_31, %c0_32] : memref<8x1024xf32, #tpu.memory_space<vmem>>, vector<8x1024xf32>
    tpu.vector_store %arg2[%c0_31, %c0_32], %104 {strides = array<i32>} : memref<8x1024xf32, #tpu.memory_space<vmem>>, vector<8x1024xf32>,
    return
  }
  func.func @transform_0(%arg0: i32) -> (i32, i32) {
    %c0_i32 = arith.constant 0 : i32
    %c0_i32_0 = arith.constant 0 : i32
    %c0_i32_1 = arith.constant 0 : i32
    return %c0_i32, %c0_i32_0 : i32, i32
  }
  func.func @transform_1(%arg0: i32) -> (i32, i32) {
    %c0_i32 = arith.constant 0 : i32
    %c0_i32_0 = arith.constant 0 : i32
    %c0_i32_1 = arith.constant 0 : i32
    return %c0_i32, %c0_i32_0 : i32, i32
  }
}

</mosaic_0001>

<llo_original>
// kernel: tpu_custom_call.1
$region0: #{tpu_custom_call.1}
  #allocation0 [shape = 'u32[]', space=smem, size = 0x4, offset = 0x4, fixed_abs, tag = 'smem constant byte address 0x4 - core index']
  #allocation1 [shape = 'u32[144,128]{1,0:T(1,128)}', space=vmem, size = 0x12000, scoped, tag = 'internal scratch']
  %s0 = inlined_call_operand.hbm [shape: f32[8,1024], index: 0, kind: input, shape index: {}]
  %s1 = inlined_call_operand.hbm [shape: f32[8,1024], index: 1, kind: output, shape index: {}]
  %s2 = sld [smem:[#allocation0]]
  $region18: #{tpu_custom_call.1} parent=0
    _
  %s4 = ssub.s32 1, %s2
  %s5 = scalar_select 0, %s4, %s2
  $region1: #{tpu_custom_call.1} parent=0
    #allocation2 [shape = 'u8[32768]{0}', space=vmem, size = 0x8000, scoped, tag = 'input window, operand 0, single buffered']
    #allocation3 [shape = 's32[1]{0}', space=sflag, size = 0x4, scoped, tag = 'scoped memory for tpu_custom_call.1']
    #allocation4 [shape = 's32[1]{0}', space=sflag, size = 0x4, scoped, tag = 'scoped memory for tpu_custom_call.1']
    #allocation5 [shape = 'u8[32768]{0}', space=vmem, size = 0x8000, scoped, tag = 'output window, operand 0, single buffered']
    %6 = vsyncpa [#allocation3], 0
    %7 = vsyncpa [#allocation4], 0
    // Predicated region
    $region2: #{tpu_custom_call.1} parent=1 // pred_check
      _
    $region3: #{tpu_custom_call.1} parent=1 // pred_check_branch
      %9 = sbr.rel (0) target = $region5
    $region4: #{tpu_custom_call.1} parent=1 // pred_region
      %s11 = ssub.s32 1024, 1024
      %12 = vsyncadd [#allocation3], %s11
      %s14 = sshll.u32 [#allocation2], 4
      %s15 = int_to_ptr.vmem [resolvable:$true] %s14
      %17 = dma.hbm_to_vmem [thread:$0]  %s0, 1024, %s15, [#allocation3]
    $region5: #{tpu_custom_call.1} parent=1 // pred_fallthru
      _
    // Predicated region
    $region6: #{tpu_custom_call.1} parent=1 // pred_check
      _
    $region7: #{tpu_custom_call.1} parent=1 // pred_check_branch
      %19 = sbr.rel (0) target = $region9
    $region8: #{tpu_custom_call.1} parent=1 // pred_region
      %20 = dma.done [#allocation3], 1024
    $region9: #{tpu_custom_call.1} parent=1 // pred_fallthru
      _
    %v21 = vld [vmem:[#allocation2] sm:$0xff]
    %v22 = vld [vmem:[#allocation2 + $0x8] sm:$0xff]
    %v23 = vld [vmem:[#allocation2 + $0x10] sm:$0xff]
    %v24 = vld [vmem:[#allocation2 + $0x18] sm:$0xff]
    %v25 = vld [vmem:[#allocation2 + $0x20] sm:$0xff]
    %v26 = vld [vmem:[#allocation2 + $0x28] sm:$0xff]
    %v27 = vld [vmem:[#allocation2 + $0x30] sm:$0xff]
    %v28 = vld [vmem:[#allocation2 + $0x38] sm:$0xff]
    %29 = vmatprep.subr.mxu0 %v22
    %30 = vmatpush1.xpose.msra.mxu0 %v21
    %31 = vmatprep.subr.mxu0 0.0
    %32 = vmatpush1.xpose.msra.mxu0 0.0
    %33 = vmatprep.subr.mxu0 0.0
    %34 = vmatpush1.xpose.msra.mxu0 0.0
    %35 = vmatprep.subr.mxu0 0.0
    %36 = vmatpush1.xpose.msra.mxu0 0.0
    %37 = vmatprep.subr.mxu0 0.0
    %38 = vmatpush1.xpose.msra.mxu0 0.0
    %39 = vmatprep.subr.mxu0 0.0
    %40 = vmatpush1.xpose.msra.mxu0 0.0
    %41 = vmatprep.subr.mxu0 0.0
    %42 = vmatpush1.xpose.msra.mxu0 0.0
    %43 = vmatprep.subr.mxu0 0.0
    %44 = vmatpush1.xpose.msra.mxu0 0.0
    %45 = vmatprep.subr.mxu0 0.0
    %46 = vmatpush1.xpose.msra.mxu0 0.0
    %47 = vmatprep.subr.mxu0 0.0
    %48 = vmatpush1.xpose.msra.mxu0 0.0
    %49 = vmatprep.subr.mxu0 0.0
    %50 = vmatpush1.xpose.msra.mxu0 0.0
    %51 = vmatprep.subr.mxu0 0.0
    %52 = vmatpush1.xpose.msra.mxu0 0.0
    %53 = vmatprep.subr.mxu0 0.0
    %54 = vmatpush1.xpose.msra.mxu0 0.0
    %55 = vmatprep.subr.mxu0 0.0
    %56 = vmatpush1.xpose.msra.mxu0 0.0
    %57 = vmatprep.subr.mxu0 0.0
    %58 = vmatpush1.xpose.msra.mxu0 0.0
    %59 = vmatprep.subr.mxu0 0.0
    %60 = vmatpush1.xpose.msra.mxu0 0.0
    %61 = vmatprep.subr.mxu0 0.0
    %62 = vmatpush1.xpose.msra.mxu0 0.0
    %63 = vmatprep.subr.mxu0 0.0
    %64 = vmatpush1.xpose.msra.mxu0 0.0
    %65 = vmatprep.subr.mxu0 0.0
    %66 = vmatpush1.xpose.msra.mxu0 0.0
    %67 = vmatprep.subr.mxu0 0.0
    %68 = vmatpush1.xpose.msra.mxu0 0.0
    %69 = vmatprep.subr.mxu0 0.0
    %70 = vmatpush1.xpose.msra.mxu0 0.0
    %71 = vmatprep.subr.mxu0 0.0
    %72 = vmatpush1.xpose.msra.mxu0 0.0
    %73 = vmatprep.subr.mxu0 0.0
    %74 = vmatpush1.xpose.msra.mxu0 0.0
    %75 = vmatprep.subr.mxu0 0.0
    %76 = vmatpush1.xpose.msra.mxu0 0.0
    %77 = vmatprep.subr.mxu0 0.0
    %78 = vmatpush1.xpose.msra.mxu0 0.0
    %79 = vmatprep.subr.mxu0 0.0
    %80 = vmatpush1.xpose.msra.mxu0 0.0
    %81 = vmatprep.subr.mxu0 0.0
    %82 = vmatpush1.xpose.msra.mxu0 0.0
    %83 = vmatprep.subr.mxu0 0.0
    %84 = vmatpush1.xpose.msra.mxu0 0.0
    %85 = vmatprep.subr.mxu0 0.0
    %86 = vmatpush1.xpose.msra.mxu0 0.0
    %87 = vmatprep.subr.mxu0 0.0
    %88 = vmatpush1.xpose.msra.mxu0 0.0
    %89 = vmatprep.subr.mxu0 0.0
    %90 = vmatpush1.xpose.msra.mxu0 0.0
    %91 = vmatprep.subr.mxu0 0.0
    %92 = vmatpush1.xpose.msra.mxu0 0.0
    %93 = vmatprep.mubr.f32.mxu0 %v22
    %94 = vmatmul.mubr.f32.gmra.mrb[0].mxu0 %v21
    %v95 = vpop.f32.mrb[0].mxu0
    %v96 = vadd.f32 0.0, %v95
    %v97 = vpop.f32.mrb[0].mxu0
    %98 = vdwg.mxu0
    %99 = vmatprep.subr.mxu0 %v24
    %100 = vmatpush1.xpose.msra.mxu0 %v23
    %101 = vmatprep.subr.mxu0 0.0
    %102 = vmatpush1.xpose.msra.mxu0 0.0
    %103 = vmatprep.subr.mxu0 0.0
    %104 = vmatpush1.xpose.msra.mxu0 0.0
    %105 = vmatprep.subr.mxu0 0.0
    %106 = vmatpush1.xpose.msra.mxu0 0.0
    %107 = vmatprep.subr.mxu0 0.0
    %108 = vmatpush1.xpose.msra.mxu0 0.0
    %109 = vmatprep.subr.mxu0 0.0
    %110 = vmatpush1.xpose.msra.mxu0 0.0
    %111 = vmatprep.subr.mxu0 0.0
    %112 = vmatpush1.xpose.msra.mxu0 0.0
    %113 = vmatprep.subr.mxu0 0.0
    %114 = vmatpush1.xpose.msra.mxu0 0.0
    %115 = vmatprep.subr.mxu0 0.0
    %116 = vmatpush1.xpose.msra.mxu0 0.0
    %117 = vmatprep.subr.mxu0 0.0
    %118 = vmatpush1.xpose.msra.mxu0 0.0
    %119 = vmatprep.subr.mxu0 0.0
    %120 = vmatpush1.xpose.msra.mxu0 0.0
    %121 = vmatprep.subr.mxu0 0.0
    %122 = vmatpush1.xpose.msra.mxu0 0.0
    %123 = vmatprep.subr.mxu0 0.0
    %124 = vmatpush1.xpose.msra.mxu0 0.0
    %125 = vmatprep.subr.mxu0 0.0
    %126 = vmatpush1.xpose.msra.mxu0 0.0
    %127 = vmatprep.subr.mxu0 0.0
    %128 = vmatpush1.xpose.msra.mxu0 0.0
    %129 = vmatprep.subr.mxu0 0.0
    %130 = vmatpush1.xpose.msra.mxu0 0.0
    %131 = vmatprep.subr.mxu0 0.0
    %132 = vmatpush1.xpose.msra.mxu0 0.0
    %133 = vmatprep.subr.mxu0 0.0
    %134 = vmatpush1.xpose.msra.mxu0 0.0
    %135 = vmatprep.subr.mxu0 0.0
    %136 = vmatpush1.xpose.msra.mxu0 0.0
    %137 = vmatprep.subr.mxu0 0.0
    %138 = vmatpush1.xpose.msra.mxu0 0.0
    %139 = vmatprep.subr.mxu0 0.0
    %140 = vmatpush1.xpose.msra.mxu0 0.0
    %141 = vmatprep.subr.mxu0 0.0
    %142 = vmatpush1.xpose.msra.mxu0 0.0
    %143 = vmatprep.subr.mxu0 0.0
    %144 = vmatpush1.xpose.msra.mxu0 0.0
    %145 = vmatprep.subr.mxu0 0.0
    %146 = vmatpush1.xpose.msra.mxu0 0.0
    %147 = vmatprep.subr.mxu0 0.0
    %148 = vmatpush1.xpose.msra.mxu0 0.0
    %149 = vmatprep.subr.mxu0 0.0
    %150 = vmatpush1.xpose.msra.mxu0 0.0
    %151 = vmatprep.subr.mxu0 0.0
    %152 = vmatpush1.xpose.msra.mxu0 0.0
    %153 = vmatprep.subr.mxu0 0.0
    %154 = vmatpush1.xpose.msra.mxu0 0.0
    %155 = vmatprep.subr.mxu0 0.0
    %156 = vmatpush1.xpose.msra.mxu0 0.0
    %157 = vmatprep.subr.mxu0 0.0
    %158 = vmatpush1.xpose.msra.mxu0 0.0
    %159 = vmatprep.subr.mxu0 0.0
    %160 = vmatpush1.xpose.msra.mxu0 0.0
    %161 = vmatprep.subr.mxu0 0.0
    %162 = vmatpush1.xpose.msra.mxu0 0.0
    %163 = vmatprep.mubr.f32.mxu0 %v24
    %164 = vmatmul.mubr.f32.gmra.mrb[0].mxu0 %v23
    %v165 = vpop.f32.mrb[0].mxu0
    %v166 = vadd.f32 %v96, %v165
    %v167 = vpop.f32.mrb[0].mxu0
    %168 = vdwg.mxu0
    %169 = vmatprep.subr.mxu0 %v26
    %170 = vmatpush1.xpose.msra.mxu0 %v25
    %171 = vmatprep.subr.mxu0 0.0
    %172 = vmatpush1.xpose.msra.mxu0 0.0
    %173 = vmatprep.subr.mxu0 0.0
    %174 = vmatpush1.xpose.msra.mxu0 0.0
    %175 = vmatprep.subr.mxu0 0.0
    %176 = vmatpush1.xpose.msra.mxu0 0.0
    %177 = vmatprep.subr.mxu0 0.0
    %178 = vmatpush1.xpose.msra.mxu0 0.0
    %179 = vmatprep.subr.mxu0 0.0
    %180 = vmatpush1.xpose.msra.mxu0 0.0
    %181 = vmatprep.subr.mxu0 0.0
    %182 = vmatpush1.xpose.msra.mxu0 0.0
    %183 = vmatprep.subr.mxu0 0.0
    %184 = vmatpush1.xpose.msra.mxu0 0.0
    %185 = vmatprep.subr.mxu0 0.0
    %186 = vmatpush1.xpose.msra.mxu0 0.0
    %187 = vmatprep.subr.mxu0 0.0
    %188 = vmatpush1.xpose.msra.mxu0 0.0
    %189 = vmatprep.subr.mxu0 0.0
    %190 = vmatpush1.xpose.msra.mxu0 0.0
    %191 = vmatprep.subr.mxu0 0.0
    %192 = vmatpush1.xpose.msra.mxu0 0.0
    %193 = vmatprep.subr.mxu0 0.0
    %194 = vmatpush1.xpose.msra.mxu0 0.0
    %195 = vmatprep.subr.mxu0 0.0
    %196 = vmatpush1.xpose.msra.mxu0 0.0
    %197 = vmatprep.subr.mxu0 0.0
    %198 = vmatpush1.xpose.msra.mxu0 0.0
    %199 = vmatprep.subr.mxu0 0.0
    %200 = vmatpush1.xpose.msra.mxu0 0.0
    %201 = vmatprep.subr.mxu0 0.0
    %202 = vmatpush1.xpose.msra.mxu0 0.0
    %203 = vmatprep.subr.mxu0 0.0
    %204 = vmatpush1.xpose.msra.mxu0 0.0
    %205 = vmatprep.subr.mxu0 0.0
    %206 = vmatpush1.xpose.msra.mxu0 0.0
    %207 = vmatprep.subr.mxu0 0.0
    %208 = vmatpush1.xpose.msra.mxu0 0.0
    %209 = vmatprep.subr.mxu0 0.0
    %210 = vmatpush1.xpose.msra.mxu0 0.0
    %211 = vmatprep.subr.mxu0 0.0
    %212 = vmatpush1.xpose.msra.mxu0 0.0
    %213 = vmatprep.subr.mxu0 0.0
    %214 = vmatpush1.xpose.msra.mxu0 0.0
    %215 = vmatprep.subr.mxu0 0.0
    %216 = vmatpush1.xpose.msra.mxu0 0.0
    %217 = vmatprep.subr.mxu0 0.0
    %218 = vmatpush1.xpose.msra.mxu0 0.0
    %219 = vmatprep.subr.mxu0 0.0
    %220 = vmatpush1.xpose.msra.mxu0 0.0
    %221 = vmatprep.subr.mxu0 0.0
    %222 = vmatpush1.xpose.msra.mxu0 0.0
    %223 = vmatprep.subr.mxu0 0.0
    %224 = vmatpush1.xpose.msra.mxu0 0.0
    %225 = vmatprep.subr.mxu0 0.0
    %226 = vmatpush1.xpose.msra.mxu0 0.0
    %227 = vmatprep.subr.mxu0 0.0
    %228 = vmatpush1.xpose.msra.mxu0 0.0
    %229 = vmatprep.subr.mxu0 0.0
    %230 = vmatpush1.xpose.msra.mxu0 0.0
    %231 = vmatprep.subr.mxu0 0.0
    %232 = vmatpush1.xpose.msra.mxu0 0.0
    %233 = vmatprep.mubr.f32.mxu0 %v26
    %234 = vmatmul.mubr.f32.gmra.mrb[0].mxu0 %v25
    %v235 = vpop.f32.mrb[0].mxu0
    %v236 = vadd.f32 %v166, %v235
    %v237 = vpop.f32.mrb[0].mxu0
    %238 = vdwg.mxu0
    %239 = vmatprep.subr.mxu0 %v28
    %240 = vmatpush1.xpose.msra.mxu0 %v27
    %241 = vmatprep.subr.mxu0 0.0
    %242 = vmatpush1.xpose.msra.mxu0 0.0
    %243 = vmatprep.subr.mxu0 0.0
    %244 = vmatpush1.xpose.msra.mxu0 0.0
    %245 = vmatprep.subr.mxu0 0.0
    %246 = vmatpush1.xpose.msra.mxu0 0.0
    %247 = vmatprep.subr.mxu0 0.0
    %248 = vmatpush1.xpose.msra.mxu0 0.0
    %249 = vmatprep.subr.mxu0 0.0
    %250 = vmatpush1.xpose.msra.mxu0 0.0
    %251 = vmatprep.subr.mxu0 0.0
    %252 = vmatpush1.xpose.msra.mxu0 0.0
    %253 = vmatprep.subr.mxu0 0.0
    %254 = vmatpush1.xpose.msra.mxu0 0.0
    %255 = vmatprep.subr.mxu0 0.0
    %256 = vmatpush1.xpose.msra.mxu0 0.0
    %257 = vmatprep.subr.mxu0 0.0
    %258 = vmatpush1.xpose.msra.mxu0 0.0
    %259 = vmatprep.subr.mxu0 0.0
    %260 = vmatpush1.xpose.msra.mxu0 0.0
    %261 = vmatprep.subr.mxu0 0.0
    %262 = vmatpush1.xpose.msra.mxu0 0.0
    %263 = vmatprep.subr.mxu0 0.0
    %264 = vmatpush1.xpose.msra.mxu0 0.0
    %265 = vmatprep.subr.mxu0 0.0
    %266 = vmatpush1.xpose.msra.mxu0 0.0
    %267 = vmatprep.subr.mxu0 0.0
    %268 = vmatpush1.xpose.msra.mxu0 0.0
    %269 = vmatprep.subr.mxu0 0.0
    %270 = vmatpush1.xpose.msra.mxu0 0.0
    %271 = vmatprep.subr.mxu0 0.0
    %272 = vmatpush1.xpose.msra.mxu0 0.0
    %273 = vmatprep.subr.mxu0 0.0
    %274 = vmatpush1.xpose.msra.mxu0 0.0
    %275 = vmatprep.subr.mxu0 0.0
    %276 = vmatpush1.xpose.msra.mxu0 0.0
    %277 = vmatprep.subr.mxu0 0.0
    %278 = vmatpush1.xpose.msra.mxu0 0.0
    %279 = vmatprep.subr.mxu0 0.0
    %280 = vmatpush1.xpose.msra.mxu0 0.0
    %281 = vmatprep.subr.mxu0 0.0
    %282 = vmatpush1.xpose.msra.mxu0 0.0
    %283 = vmatprep.subr.mxu0 0.0
    %284 = vmatpush1.xpose.msra.mxu0 0.0
    %285 = vmatprep.subr.mxu0 0.0
    %286 = vmatpush1.xpose.msra.mxu0 0.0
    %287 = vmatprep.subr.mxu0 0.0
    %288 = vmatpush1.xpose.msra.mxu0 0.0
    %289 = vmatprep.subr.mxu0 0.0
    %290 = vmatpush1.xpose.msra.mxu0 0.0
    %291 = vmatprep.subr.mxu0 0.0
    %292 = vmatpush1.xpose.msra.mxu0 0.0
    %293 = vmatprep.subr.mxu0 0.0
    %294 = vmatpush1.xpose.msra.mxu0 0.0
    %295 = vmatprep.subr.mxu0 0.0
    %296 = vmatpush1.xpose.msra.mxu0 0.0
    %297 = vmatprep.subr.mxu0 0.0
    %298 = vmatpush1.xpose.msra.mxu0 0.0
    %299 = vmatprep.subr.mxu0 0.0
    %300 = vmatpush1.xpose.msra.mxu0 0.0
    %301 = vmatprep.subr.mxu0 0.0
    %302 = vmatpush1.xpose.msra.mxu0 0.0
    %303 = vmatprep.mubr.f32.mxu0 %v28
    %304 = vmatmul.mubr.f32.gmra.mrb[0].mxu0 %v27
    %v305 = vpop.f32.mrb[0].mxu0
    %v306 = vadd.f32 %v236, %v305
    %v307 = vpop.f32.mrb[0].mxu0
    %308 = vdwg.mxu0
    %v309 = vlaneseq
    %v310 = vshrl.u32 %v309, 7
    %v311 = vlaneseq
    %v312 = vand.u32 %v311, 127
    %vm313 = vcmp.eq.s32.totalorder %v310, %v312
    %v314 = vsel %vm313, %v306, 0.0
    %vm315 = vcmask 64512
    %v316 = vsel %vm315, %v314, 0.0
    %317 = vadd.xlane.f32.xlu0 %v316
    %v318 = vpop.xlane.xlu0 %317
    %v319 = vrot.slane %v316, 4
    %v320 = vadd.f32 %v316, %v319
    %v321 = vrot.slane %v320, 2
    %v322 = vadd.f32 %v320, %v321
    %v323 = vrot.slane %v322, 1
    %v324 = vadd.f32 %v322, %v323
    %v325 = vmul.f32 %v318, %v324
    %v326 = vrsqrt.pop %v325
    %v327 = vmul.f32 %v325, %v326
    %vm328 = vcmp.eq.f32.partialorder %v325, inf
    %v329 = vsel %vm328, %v325, %v327
    %vm330 = vcmp.eq.f32.partialorder %v325, 0.0
    %v331 = vand.u32 %v325, 2147483648
    %v332 = vsel %vm330, %v331, %v329
    %v333 = vmax.f32 %v332, 1e-08
    %v334 = vrcp.pop %v333
    %v335 = vmul.f32 %v306, %v334
    %v336 = vsel %vm313, -1.0, %v335
    %v337 = vsel %vm315, %v336, -inf
    %338 = vmax.xlane.f32.xlu0 %v337
    %v339 = vpop.xlane.xlu0 %338
    %vm340 = vcmp.ge.f32.partialorder %v336, %v339
    %v341 = vsel %vm340, %v312, 8
    %v342 = vsel %vm315, %v341, 2147483647
    %v343 = vand.u32 %v342, 65535
    %v344 = vshra.s32 %v342, 16
    %v345 = vcvt.s32.f32 %v343
    %v346 = vcvt.s32.f32 %v344
    %347 = vmin.xlane.f32.xlu0 %v346
    %v348 = vpop.xlane.xlu0 %347
    %vm349 = vcmp.eq.f32.partialorder %v346, %v348
    %v350 = vsel %vm349, %v345, inf
    %351 = vmin.xlane.f32.xlu0 %v350
    %v352 = vpop.xlane.xlu0 %351
    %v353 = vcvt.f32.s32 %v352
    %v354 = vcvt.f32.s32 %v348
    %v355 = vshll.u32 %v354, 16
    %v356 = vadd.s32 %v355, %v353
    %vm357 = vcmp.eq.s32.totalorder %v312, %v356
    %v358 = vsel %vm357, 1, 0
    %v359 = vcvt.s32.f32 %v358
    %v360 = vadd.f32 %v359, 0.0
    %vm361 = vcmp.gt.f32.partialorder %v359, 0.0
    %v362 = vsel %vm361, -3.0, %v336
    %v363 = vsel %vm315, %v362, -inf
    %364 = vmax.xlane.f32.xlu0 %v363
    %v365 = vpop.xlane.xlu0 %364
    %vm366 = vcmp.ge.f32.partialorder %v362, %v365
    %v367 = vsel %vm366, %v312, 8
    %v368 = vsel %vm315, %v367, 2147483647
    %v369 = vand.u32 %v368, 65535
    %v370 = vshra.s32 %v368, 16
    %v371 = vcvt.s32.f32 %v369
    %v372 = vcvt.s32.f32 %v370
    %373 = vmin.xlane.f32.xlu0 %v372
    %v374 = vpop.xlane.xlu0 %373
    %vm375 = vcmp.eq.f32.partialorder %v372, %v374
    %v376 = vsel %vm375, %v371, inf
    %377 = vmin.xlane.f32.xlu0 %v376
    %v378 = vpop.xlane.xlu0 %377
    %v379 = vcvt.f32.s32 %v378
    %v380 = vcvt.f32.s32 %v374
    %v381 = vshll.u32 %v380, 16
    %v382 = vadd.s32 %v381, %v379
    %vm383 = vcmp.eq.s32.totalorder %v312, %v382
    %v384 = vsel %vm383, 1, 0
    %v385 = vcvt.s32.f32 %v384
    %v386 = vadd.f32 %v360, %v385
    %vm387 = vcmp.gt.f32.partialorder %v385, 0.0
    %v388 = vsel %vm387, -3.0, %v362
    %v389 = vsel %vm315, %v388, -inf
    %390 = vmax.xlane.f32.xlu0 %v389
    %v391 = vpop.xlane.xlu0 %390
    %vm392 = vcmp.ge.f32.partialorder %v388, %v391
    %v393 = vsel %vm392, %v312, 8
    %v394 = vsel %vm315, %v393, 2147483647
    %v395 = vand.u32 %v394, 65535
    %v396 = vshra.s32 %v394, 16
    %v397 = vcvt.s32.f32 %v395
    %v398 = vcvt.s32.f32 %v396
    %399 = vmin.xlane.f32.xlu0 %v398
    %v400 = vpop.xlane.xlu0 %399
    %vm401 = vcmp.eq.f32.partialorder %v398, %v400
    %v402 = vsel %vm401, %v397, inf
    %403 = vmin.xlane.f32.xlu0 %v402
    %v404 = vpop.xlane.xlu0 %403
    %v405 = vcvt.f32.s32 %v404
    %v406 = vcvt.f32.s32 %v400
    %v407 = vshll.u32 %v406, 16
    %v408 = vadd.s32 %v407, %v405
    %vm409 = vcmp.eq.s32.totalorder %v312, %v408
    %v410 = vsel %vm409, 1, 0
    %v411 = vcvt.s32.f32 %v410
    %v412 = vadd.f32 %v386, %v411
    %vm413 = vcmp.gt.f32.partialorder %v411, 0.0
    %v414 = vsel %vm413, -3.0, %v388
    %v415 = vsel %vm315, %v414, -inf
    %416 = vmax.xlane.f32.xlu0 %v415
    %v417 = vpop.xlane.xlu0 %416
    %vm418 = vcmp.ge.f32.partialorder %v414, %v417
    %v419 = vsel %vm418, %v312, 8
    %v420 = vsel %vm315, %v419, 2147483647
    %v421 = vand.u32 %v420, 65535
    %v422 = vshra.s32 %v420, 16
    %v423 = vcvt.s32.f32 %v421
    %v424 = vcvt.s32.f32 %v422
    %425 = vmin.xlane.f32.xlu0 %v424
    %v426 = vpop.xlane.xlu0 %425
    %vm427 = vcmp.eq.f32.partialorder %v424, %v426
    %v428 = vsel %vm427, %v423, inf
    %429 = vmin.xlane.f32.xlu0 %v428
    %v430 = vpop.xlane.xlu0 %429
    %v431 = vcvt.f32.s32 %v430
    %v432 = vcvt.f32.s32 %v426
    %v433 = vshll.u32 %v432, 16
    %v434 = vadd.s32 %v433, %v431
    %vm435 = vcmp.eq.s32.totalorder %v312, %v434
    %v436 = vsel %vm435, 1, 0
    %v437 = vcvt.s32.f32 %v436
    %v438 = vadd.f32 %v412, %v437
    %vm439 = vcmp.gt.f32.partialorder %v437, 0.0
    %v440 = vsel %vm439, -3.0, %v414
    %v441 = vsel %vm315, %v440, -inf
    %442 = vmax.xlane.f32.xlu0 %v441
    %v443 = vpop.xlane.xlu0 %442
    %vm444 = vcmp.ge.f32.partialorder %v440, %v443
    %v445 = vsel %vm444, %v312, 8
    %v446 = vsel %vm315, %v445, 2147483647
    %v447 = vand.u32 %v446, 65535
    %v448 = vshra.s32 %v446, 16
    %v449 = vcvt.s32.f32 %v447
    %v450 = vcvt.s32.f32 %v448
    %451 = vmin.xlane.f32.xlu0 %v450
    %v452 = vpop.xlane.xlu0 %451
    %vm453 = vcmp.eq.f32.partialorder %v450, %v452
    %v454 = vsel %vm453, %v449, inf
    %455 = vmin.xlane.f32.xlu0 %v454
    %v456 = vpop.xlane.xlu0 %455
    %v457 = vcvt.f32.s32 %v456
    %v458 = vcvt.f32.s32 %v452
    %v459 = vshll.u32 %v458, 16
    %v460 = vadd.s32 %v459, %v457
    %vm461 = vcmp.eq.s32.totalorder %v312, %v460
    %v462 = vsel %vm461, 1, 0
    %v463 = vcvt.s32.f32 %v462
    %v464 = vadd.f32 %v438, %v463
    %v466 = vsel %vm315, %v464, 0
    %468 = vmatprep.subr.mxu0 %v22
    %469 = vmatpush1.msra.mxu0 %v21
    %470 = vmatprep.subr.mxu0 0.0
    %471 = vmatpush1.msra.mxu0 0.0
    %472 = vmatprep.subr.mxu0 0.0
    %473 = vmatpush1.msra.mxu0 0.0
    %474 = vmatprep.subr.mxu0 0.0
    %475 = vmatpush1.msra.mxu0 0.0
    %476 = vmatprep.subr.mxu0 0.0
    %477 = vmatpush1.msra.mxu0 0.0
    %478 = vmatprep.subr.mxu0 0.0
    %479 = vmatpush1.msra.mxu0 0.0
    %480 = vmatprep.subr.mxu0 0.0
    %481 = vmatpush1.msra.mxu0 0.0
    %482 = vmatprep.subr.mxu0 0.0
    %483 = vmatpush1.msra.mxu0 0.0
    %484 = vmatprep.subr.mxu0 0.0
    %485 = vmatpush1.msra.mxu0 0.0
    %486 = vmatprep.subr.mxu0 0.0
    %487 = vmatpush1.msra.mxu0 0.0
    %488 = vmatprep.subr.mxu0 0.0
    %489 = vmatpush1.msra.mxu0 0.0
    %490 = vmatprep.subr.mxu0 0.0
    %491 = vmatpush1.msra.mxu0 0.0
    %492 = vmatprep.subr.mxu0 0.0
    %493 = vmatpush1.msra.mxu0 0.0
    %494 = vmatprep.subr.mxu0 0.0
    %495 = vmatpush1.msra.mxu0 0.0
    %496 = vmatprep.subr.mxu0 0.0
    %497 = vmatpush1.msra.mxu0 0.0
    %498 = vmatprep.subr.mxu0 0.0
    %499 = vmatpush1.msra.mxu0 0.0
    %500 = vmatprep.subr.mxu0 0.0
    %501 = vmatpush1.msra.mxu0 0.0
    %502 = vmatprep.subr.mxu0 0.0
    %503 = vmatpush1.msra.mxu0 0.0
    %504 = vmatprep.subr.mxu0 0.0
    %505 = vmatpush1.msra.mxu0 0.0
    %506 = vmatprep.subr.mxu0 0.0
    %507 = vmatpush1.msra.mxu0 0.0
    %508 = vmatprep.subr.mxu0 0.0
    %509 = vmatpush1.msra.mxu0 0.0
    %510 = vmatprep.subr.mxu0 0.0
    %511 = vmatpush1.msra.mxu0 0.0
    %512 = vmatprep.subr.mxu0 0.0
    %513 = vmatpush1.msra.mxu0 0.0
    %514 = vmatprep.subr.mxu0 0.0
    %515 = vmatpush1.msra.mxu0 0.0
    %516 = vmatprep.subr.mxu0 0.0
    %517 = vmatpush1.msra.mxu0 0.0
    %518 = vmatprep.subr.mxu0 0.0
    %519 = vmatpush1.msra.mxu0 0.0
    %520 = vmatprep.subr.mxu0 0.0
    %521 = vmatpush1.msra.mxu0 0.0
    %522 = vmatprep.subr.mxu0 0.0
    %523 = vmatpush1.msra.mxu0 0.0
    %524 = vmatprep.subr.mxu0 0.0
    %525 = vmatpush1.msra.mxu0 0.0
    %526 = vmatprep.subr.mxu0 0.0
    %527 = vmatpush1.msra.mxu0 0.0
    %528 = vmatprep.subr.mxu0 0.0
    %529 = vmatpush1.msra.mxu0 0.0
    %530 = vmatprep.subr.mxu0 0.0
    %531 = vmatpush1.msra.mxu0 0.0
    %532 = vmatprep.mubr.f32.mxu0 0.0
    %533 = vmatmul.mubr.f32.gmra.mrb[0].mxu0 %v466
    %v534 = vpop.f32.mrb[0].mxu0
    %v535 = vadd.f32 0.0, %v534
    %v536 = vpop.f32.mrb[0].mxu0
    %v537 = vadd.f32 0.0, %v536
    %538 = vdwg.mxu0
    %539 = vmatprep.subr.mxu0 %v24
    %540 = vmatpush1.msra.mxu0 %v23
    %541 = vmatprep.subr.mxu0 0.0
    %542 = vmatpush1.msra.mxu0 0.0
    %543 = vmatprep.subr.mxu0 0.0
    %544 = vmatpush1.msra.mxu0 0.0
    %545 = vmatprep.subr.mxu0 0.0
    %546 = vmatpush1.msra.mxu0 0.0
    %547 = vmatprep.subr.mxu0 0.0
    %548 = vmatpush1.msra.mxu0 0.0
    %549 = vmatprep.subr.mxu0 0.0
    %550 = vmatpush1.msra.mxu0 0.0
    %551 = vmatprep.subr.mxu0 0.0
    %552 = vmatpush1.msra.mxu0 0.0
    %553 = vmatprep.subr.mxu0 0.0
    %554 = vmatpush1.msra.mxu0 0.0
    %555 = vmatprep.subr.mxu0 0.0
    %556 = vmatpush1.msra.mxu0 0.0
    %557 = vmatprep.subr.mxu0 0.0
    %558 = vmatpush1.msra.mxu0 0.0
    %559 = vmatprep.subr.mxu0 0.0
    %560 = vmatpush1.msra.mxu0 0.0
    %561 = vmatprep.subr.mxu0 0.0
    %562 = vmatpush1.msra.mxu0 0.0
    %563 = vmatprep.subr.mxu0 0.0
    %564 = vmatpush1.msra.mxu0 0.0
    %565 = vmatprep.subr.mxu0 0.0
    %566 = vmatpush1.msra.mxu0 0.0
    %567 = vmatprep.subr.mxu0 0.0
    %568 = vmatpush1.msra.mxu0 0.0
    %569 = vmatprep.subr.mxu0 0.0
    %570 = vmatpush1.msra.mxu0 0.0
    %571 = vmatprep.subr.mxu0 0.0
    %572 = vmatpush1.msra.mxu0 0.0
    %573 = vmatprep.subr.mxu0 0.0
    %574 = vmatpush1.msra.mxu0 0.0
    %575 = vmatprep.subr.mxu0 0.0
    %576 = vmatpush1.msra.mxu0 0.0
    %577 = vmatprep.subr.mxu0 0.0
    %578 = vmatpush1.msra.mxu0 0.0
    %579 = vmatprep.subr.mxu0 0.0
    %580 = vmatpush1.msra.mxu0 0.0
    %581 = vmatprep.subr.mxu0 0.0
    %582 = vmatpush1.msra.mxu0 0.0
    %583 = vmatprep.subr.mxu0 0.0
    %584 = vmatpush1.msra.mxu0 0.0
    %585 = vmatprep.subr.mxu0 0.0
    %586 = vmatpush1.msra.mxu0 0.0
    %587 = vmatprep.subr.mxu0 0.0
    %588 = vmatpush1.msra.mxu0 0.0
    %589 = vmatprep.subr.mxu0 0.0
    %590 = vmatpush1.msra.mxu0 0.0
    %591 = vmatprep.subr.mxu0 0.0
    %592 = vmatpush1.msra.mxu0 0.0
    %593 = vmatprep.subr.mxu0 0.0
    %594 = vmatpush1.msra.mxu0 0.0
    %595 = vmatprep.subr.mxu0 0.0
    %596 = vmatpush1.msra.mxu0 0.0
    %597 = vmatprep.subr.mxu0 0.0
    %598 = vmatpush1.msra.mxu0 0.0
    %599 = vmatprep.subr.mxu0 0.0
    %600 = vmatpush1.msra.mxu0 0.0
    %601 = vmatprep.subr.mxu0 0.0
    %602 = vmatpush1.msra.mxu0 0.0
    %603 = vmatprep.mubr.f32.mxu0 0.0
    %604 = vmatmul.mubr.f32.gmra.mrb[0].mxu0 %v466
    %v605 = vpop.f32.mrb[0].mxu0
    %v606 = vadd.f32 0.0, %v605
    %v607 = vpop.f32.mrb[0].mxu0
    %v608 = vadd.f32 0.0, %v607
    %609 = vdwg.mxu0
    %610 = vmatprep.subr.mxu0 %v26
    %611 = vmatpush1.msra.mxu0 %v25
    %612 = vmatprep.subr.mxu0 0.0
    %613 = vmatpush1.msra.mxu0 0.0
    %614 = vmatprep.subr.mxu0 0.0
    %615 = vmatpush1.msra.mxu0 0.0
    %616 = vmatprep.subr.mxu0 0.0
    %617 = vmatpush1.msra.mxu0 0.0
    %618 = vmatprep.subr.mxu0 0.0
    %619 = vmatpush1.msra.mxu0 0.0
    %620 = vmatprep.subr.mxu0 0.0
    %621 = vmatpush1.msra.mxu0 0.0
    %622 = vmatprep.subr.mxu0 0.0
    %623 = vmatpush1.msra.mxu0 0.0
    %624 = vmatprep.subr.mxu0 0.0
    %625 = vmatpush1.msra.mxu0 0.0
    %626 = vmatprep.subr.mxu0 0.0
    %627 = vmatpush1.msra.mxu0 0.0
    %628 = vmatprep.subr.mxu0 0.0
    %629 = vmatpush1.msra.mxu0 0.0
    %630 = vmatprep.subr.mxu0 0.0
    %631 = vmatpush1.msra.mxu0 0.0
    %632 = vmatprep.subr.mxu0 0.0
    %633 = vmatpush1.msra.mxu0 0.0
    %634 = vmatprep.subr.mxu0 0.0
    %635 = vmatpush1.msra.mxu0 0.0
    %636 = vmatprep.subr.mxu0 0.0
    %637 = vmatpush1.msra.mxu0 0.0
    %638 = vmatprep.subr.mxu0 0.0
    %639 = vmatpush1.msra.mxu0 0.0
    %640 = vmatprep.subr.mxu0 0.0
    %641 = vmatpush1.msra.mxu0 0.0
    %642 = vmatprep.subr.mxu0 0.0
    %643 = vmatpush1.msra.mxu0 0.0
    %644 = vmatprep.subr.mxu0 0.0
    %645 = vmatpush1.msra.mxu0 0.0
    %646 = vmatprep.subr.mxu0 0.0
    %647 = vmatpush1.msra.mxu0 0.0
    %648 = vmatprep.subr.mxu0 0.0
    %649 = vmatpush1.msra.mxu0 0.0
    %650 = vmatprep.subr.mxu0 0.0
    %651 = vmatpush1.msra.mxu0 0.0
    %652 = vmatprep.subr.mxu0 0.0
    %653 = vmatpush1.msra.mxu0 0.0
    %654 = vmatprep.subr.mxu0 0.0
    %655 = vmatpush1.msra.mxu0 0.0
    %656 = vmatprep.subr.mxu0 0.0
    %657 = vmatpush1.msra.mxu0 0.0
    %658 = vmatprep.subr.mxu0 0.0
    %659 = vmatpush1.msra.mxu0 0.0
    %660 = vmatprep.subr.mxu0 0.0
    %661 = vmatpush1.msra.mxu0 0.0
    %662 = vmatprep.subr.mxu0 0.0
    %663 = vmatpush1.msra.mxu0 0.0
    %664 = vmatprep.subr.mxu0 0.0
    %665 = vmatpush1.msra.mxu0 0.0
    %666 = vmatprep.subr.mxu0 0.0
    %667 = vmatpush1.msra.mxu0 0.0
    %668 = vmatprep.subr.mxu0 0.0
    %669 = vmatpush1.msra.mxu0 0.0
    %670 = vmatprep.subr.mxu0 0.0
    %671 = vmatpush1.msra.mxu0 0.0
    %672 = vmatprep.subr.mxu0 0.0
    %673 = vmatpush1.msra.mxu0 0.0
    %674 = vmatprep.mubr.f32.mxu0 0.0
    %675 = vmatmul.mubr.f32.gmra.mrb[0].mxu0 %v466
    %v676 = vpop.f32.mrb[0].mxu0
    %v677 = vadd.f32 0.0, %v676
    %v678 = vpop.f32.mrb[0].mxu0
    %v679 = vadd.f32 0.0, %v678
    %680 = vdwg.mxu0
    %681 = vmatprep.subr.mxu0 %v28
    %682 = vmatpush1.msra.mxu0 %v27
    %683 = vmatprep.subr.mxu0 0.0
    %684 = vmatpush1.msra.mxu0 0.0
    %685 = vmatprep.subr.mxu0 0.0
    %686 = vmatpush1.msra.mxu0 0.0
    %687 = vmatprep.subr.mxu0 0.0
    %688 = vmatpush1.msra.mxu0 0.0
    %689 = vmatprep.subr.mxu0 0.0
    %690 = vmatpush1.msra.mxu0 0.0
    %691 = vmatprep.subr.mxu0 0.0
    %692 = vmatpush1.msra.mxu0 0.0
    %693 = vmatprep.subr.mxu0 0.0
    %694 = vmatpush1.msra.mxu0 0.0
    %695 = vmatprep.subr.mxu0 0.0
    %696 = vmatpush1.msra.mxu0 0.0
    %697 = vmatprep.subr.mxu0 0.0
    %698 = vmatpush1.msra.mxu0 0.0
    %699 = vmatprep.subr.mxu0 0.0
    %700 = vmatpush1.msra.mxu0 0.0
    %701 = vmatprep.subr.mxu0 0.0
    %702 = vmatpush1.msra.mxu0 0.0
    %703 = vmatprep.subr.mxu0 0.0
    %704 = vmatpush1.msra.mxu0 0.0
    %705 = vmatprep.subr.mxu0 0.0
    %706 = vmatpush1.msra.mxu0 0.0
    %707 = vmatprep.subr.mxu0 0.0
    %708 = vmatpush1.msra.mxu0 0.0
    %709 = vmatprep.subr.mxu0 0.0
    %710 = vmatpush1.msra.mxu0 0.0
    %711 = vmatprep.subr.mxu0 0.0
    %712 = vmatpush1.msra.mxu0 0.0
    %713 = vmatprep.subr.mxu0 0.0
    %714 = vmatpush1.msra.mxu0 0.0
    %715 = vmatprep.subr.mxu0 0.0
    %716 = vmatpush1.msra.mxu0 0.0
    %717 = vmatprep.subr.mxu0 0.0
    %718 = vmatpush1.msra.mxu0 0.0
    %719 = vmatprep.subr.mxu0 0.0
    %720 = vmatpush1.msra.mxu0 0.0
    %721 = vmatprep.subr.mxu0 0.0
    %722 = vmatpush1.msra.mxu0 0.0
    %723 = vmatprep.subr.mxu0 0.0
    %724 = vmatpush1.msra.mxu0 0.0
    %725 = vmatprep.subr.mxu0 0.0
    %726 = vmatpush1.msra.mxu0 0.0
    %727 = vmatprep.subr.mxu0 0.0
    %728 = vmatpush1.msra.mxu0 0.0
    %729 = vmatprep.subr.mxu0 0.0
    %730 = vmatpush1.msra.mxu0 0.0
    %731 = vmatprep.subr.mxu0 0.0
    %732 = vmatpush1.msra.mxu0 0.0
    %733 = vmatprep.subr.mxu0 0.0
    %734 = vmatpush1.msra.mxu0 0.0
    %735 = vmatprep.subr.mxu0 0.0
    %736 = vmatpush1.msra.mxu0 0.0
    %737 = vmatprep.subr.mxu0 0.0
    %738 = vmatpush1.msra.mxu0 0.0
    %739 = vmatprep.subr.mxu0 0.0
    %740 = vmatpush1.msra.mxu0 0.0
    %741 = vmatprep.subr.mxu0 0.0
    %742 = vmatpush1.msra.mxu0 0.0
    %743 = vmatprep.subr.mxu0 0.0
    %744 = vmatpush1.msra.mxu0 0.0
    %745 = vmatprep.mubr.f32.mxu0 0.0
    %746 = vmatmul.mubr.f32.gmra.mrb[0].mxu0 %v466
    %v747 = vpop.f32.mrb[0].mxu0
    %v748 = vadd.f32 0.0, %v747
    %v749 = vpop.f32.mrb[0].mxu0
    %v750 = vadd.f32 0.0, %v749
    %751 = vdwg.mxu0
    %v752 = vmul.f32 %v535, 0.2
    %v753 = vmul.f32 %v537, 0.2
    %v754 = vmul.f32 %v606, 0.2
    %v755 = vmul.f32 %v608, 0.2
    %v756 = vmul.f32 %v677, 0.2
    %v757 = vmul.f32 %v679, 0.2
    %v758 = vmul.f32 %v748, 0.2
    %v759 = vmul.f32 %v750, 0.2
    %760 = vst [vmem:[#allocation5] sm:$0xff] %v752
    %761 = vst [vmem:[#allocation5 + $0x8] sm:$0xff] %v753
    %762 = vst [vmem:[#allocation5 + $0x10] sm:$0xff] %v754
    %763 = vst [vmem:[#allocation5 + $0x18] sm:$0xff] %v755
    %764 = vst [vmem:[#allocation5 + $0x20] sm:$0xff] %v756
    %765 = vst [vmem:[#allocation5 + $0x28] sm:$0xff] %v757
    %766 = vst [vmem:[#allocation5 + $0x30] sm:$0xff] %v758
    %767 = vst [vmem:[#allocation5 + $0x38] sm:$0xff] %v759
    // Predicated region
    $region10: #{tpu_custom_call.1} parent=1 // pred_check
      _
    $region11: #{tpu_custom_call.1} parent=1 // pred_check_branch
      %769 = sbr.rel (0) target = $region13
    $region12: #{tpu_custom_call.1} parent=1 // pred_region
      %s771 = ssub.s32 1024, 1024
      %772 = vsyncadd [#allocation4], %s771
      %s774 = sshll.u32 [#allocation5], 4
      %s775 = int_to_ptr.vmem [resolvable:$true] %s774
      %777 = dma.vmem_to_hbm [thread:$0]  %s775, 1024, %s1, [#allocation4]
    $region13: #{tpu_custom_call.1} parent=1 // pred_fallthru
      _
    // Predicated region
    $region14: #{tpu_custom_call.1} parent=1 // pred_check
      _
    $region15: #{tpu_custom_call.1} parent=1 // pred_check_branch
      %779 = sbr.rel (0) target = $region17
    $region16: #{tpu_custom_call.1} parent=1 // pred_region
      %780 = dma.done [#allocation4], 1024
    $region17: #{tpu_custom_call.1} parent=1 // pred_fallthru
      _
    %781 = vsyncpa [#allocation3], 1
    %782 = vsyncpa [#allocation4], 1

</llo_original>
